<compile_context>
chip_gen: v5e
topology: v5e:2x2
jax: 0.10.0
libtpu: 0.0.40
codegen_flags: <defaults>
</compile_context>

<pallas_src>
import jax
import jax.numpy as jnp
from jax.experimental import pallas as pl
from jax.experimental.pallas import tpu as pltpu


def _round_up(x: int, m: int) -> int:
    return ((x + m - 1) // m) * m


def _detect_num_cores() -> int:
    """Best-effort TensorCores-per-chip (2 on v7x / megacore parts, else 1)."""
    try:
        dev = jax.devices()[0]
        for attr in ("num_cores", "core_count"):
            n = getattr(dev, attr, None)
            if n:
                return int(n)
    except Exception:
        pass
    return 1


def actor_kernel(x_ref, w1_ref, b1_ref, w2_ref, b2_ref, w3_ref, b3_ref, o_ref):
    """One TB-row batch tile of the fused 3-layer MLP."""
    x = x_ref[...]                                    # (TB, IN)  f32
    w1 = w1_ref[...]                                  # (IN, H)   f32

    # --- layer 1: VPU outer-product accumulation over the tiny K axis -------
    acc = x[:, 0:1] * w1[0:1, :]
    for k in range(1, w1.shape[0]):                   # static unroll, IN tiny
        acc = acc + x[:, k:k + 1] * w1[k:k + 1, :]
    h1 = jnp.maximum(acc + b1_ref[...], 0.0)          # ReLU, f32 epilogue

    # --- layer 2: MXU (H x H), f32 accumulation; weights already matmul_dtype
    h2 = jnp.dot(h1.astype(w2_ref.dtype), w2_ref[...],
                 preferred_element_type=jnp.float32) + b2_ref[...]
    h2 = jnp.maximum(h2, 0.0)

    # --- layer 3: MXU into the unpadded (TB, out_size) output ---------------
    z = jnp.dot(h2.astype(w3_ref.dtype), w3_ref[...],
                preferred_element_type=jnp.float32) + b3_ref[...]
    o_ref[...] = (20.0 * jnp.tanh(z)).astype(o_ref.dtype)


def actor_forward(state, params, *, block_b=1024, matmul_dtype=jnp.float32,
                  out_dtype=jnp.float32, num_cores=None):
    """state: [B, input_size] f32; params: dict of transposed weights / biases."""
    w1t, b1 = params["w1t"], params["b1"]
    w2t, b2 = params["w2t"], params["b2"]
    w3t, b3 = params["w3t"], params["b3"]
    B, in_size = state.shape
    out_size = w3t.shape[1]

    # Pre-cast MXU-layer weights once in the wrapper (no per-grid-step casts).
    if jnp.dtype(matmul_dtype) != jnp.dtype(jnp.float32):
        w2t = w2t.astype(matmul_dtype)
        w3t = w3t.astype(matmul_dtype)

    if num_cores is None:
        num_cores = _detect_num_cores()
    num_cores = max(int(num_cores), 1)

    # Batch tiling: large tiles (step-overhead bound), >= num_cores grid steps
    # so "parallel" actually uses both TCs on v7x; single maximal tile on 1-TC
    # chips. Always a multiple of 8 (sublane rule), capped so 32 MiB VMEM fits.
    TB = min(block_b, _round_up(pl.cdiv(B, num_cores), 8))
    TB = min(max(_round_up(TB, 8), 8), 8192)
    B_pad = _round_up(B, TB)
    if B_pad != B:
        state = jnp.pad(state, ((0, B_pad - B), (0, 0)))
    grid = (B_pad // TB,)

    const = lambda a: pl.BlockSpec(a.shape, lambda i: (0,) * a.ndim)

    out = pl.pallas_call(
        actor_kernel,
        out_shape=jax.ShapeDtypeStruct((B_pad, out_size), out_dtype),
        grid=grid,
        in_specs=[
            pl.BlockSpec((TB, in_size), lambda i: (i, 0)),   # batch tile
            const(w1t), const(b1),                           # VMEM-resident
            const(w2t), const(b2),
            const(w3t), const(b3),
        ],
        out_specs=pl.BlockSpec((TB, out_size), lambda i: (i, 0)),
        compiler_params=pltpu.CompilerParams(
            dimension_semantics=("parallel",),
            vmem_limit_bytes=32 * 1024 * 1024),
    )(state, w1t, b1, w2t, b2, w3t, b3)

    return out[:B]


def init_actor_params(key, input_size, hidden_size, output_size):
    """PyTorch nn.Linear-style init (U[-1/sqrt(fan_in), 1/sqrt(fan_in)]);
    weights stored transposed [in, out]."""
    ks = jax.random.split(key, 6)

    def linear(kw, kb, fan_in, fan_out):
        bound = 1.0 / jnp.sqrt(jnp.float32(fan_in))
        w_t = jax.random.uniform(kw, (fan_in, fan_out), jnp.float32, -bound, bound)
        b = jax.random.uniform(kb, (1, fan_out), jnp.float32, -bound, bound)
        return w_t, b

    w1t, b1 = linear(ks[0], ks[1], input_size, hidden_size)
    w2t, b2 = linear(ks[2], ks[3], hidden_size, hidden_size)
    w3t, b3 = linear(ks[4], ks[5], hidden_size, output_size)
    return {"w1t": w1t, "b1": b1, "w2t": w2t, "b2": b2, "w3t": w3t, "b3": b3}


def actor_reference(state, params):
    """Plain-JAX reference for correctness checking."""
    h1 = jnp.maximum(state @ params["w1t"] + params["b1"], 0.0)
    h2 = jnp.maximum(h1 @ params["w2t"] + params["b2"], 0.0)
    return 20.0 * jnp.tanh(h2 @ params["w3t"] + params["b3"])


if __name__ == "__main__":
    # CartPole-v1: observation dim 4, action dim 2; small hidden.
    input_size, hidden_size, output_size = 4, 32, 2

    key = jax.random.PRNGKey(0)
    k_params, k_state, k_state2 = jax.random.split(key, 3)
    params = init_actor_params(k_params, input_size, hidden_size, output_size)

    # Batched path (f32): one maximal tile on 1-TC chips, 2 tiles on 2-TC chips.
    batch = 256
    state = jax.random.normal(k_state, (batch, input_size), jnp.float32)
    out = jax.block_until_ready(actor_forward(state, params))
    ref = actor_reference(state, params)
    assert out.shape == (batch, output_size)
    assert jnp.allclose(out, ref, atol=1e-5, rtol=1e-5), "mismatch vs reference (batched f32)"

    # Ragged tiny batch exercises the batch-padding path (TB shrinks to 8).
    state2 = jax.random.normal(k_state2, (6, input_size), jnp.float32)
    out2 = jax.block_until_ready(actor_forward(state2, params))
    ref2 = actor_reference(state2, params)
    assert out2.shape == (6, output_size)
    assert jnp.allclose(out2, ref2, atol=1e-5, rtol=1e-5), "mismatch vs reference (ragged)"

    # bf16-MXU path (weights pre-cast in wrapper); looser tolerance for bf16.
    out3 = jax.block_until_ready(
        actor_forward(state, params, matmul_dtype=jnp.bfloat16))
    assert out3.shape == (batch, output_size)
    assert jnp.allclose(out3, ref, atol=0.5, rtol=0.05), "mismatch vs reference (bf16 MXU)"

    print("KERNEL_OK")
</pallas_src>

<mosaic_0001>
module attributes {stable_mosaic.version = 11 : i64} {
  func.func @actor_kernel(%arg0: i32, %arg1: memref<256x4xf32, #tpu.memory_space<vmem>>, %arg2: memref<4x32xf32, #tpu.memory_space<vmem>>, %arg3: memref<1x32xf32, #tpu.memory_space<vmem>>, %arg4: memref<32x32xf32, #tpu.memory_space<vmem>>, %arg5: memref<1x32xf32, #tpu.memory_space<vmem>>, %arg6: memref<32x2xf32, #tpu.memory_space<vmem>>, %arg7: memref<1x2xf32, #tpu.memory_space<vmem>>, %arg8: memref<256x2xf32, #tpu.memory_space<vmem>>) attributes {dimension_semantics = [#tpu.dimension_semantics<parallel>], iteration_bounds = array<i64: 1>, scalar_prefetch = 0 : i64, scratch_operands = 0 : i64, tpu.core_type = #tpu.core_type<tc>, window_params = [{transform_indices = @transform_0, window_bounds = array<i64: 256, 4>}, {pipeline_mode = #tpu.pipeline_mode<synchronous>, transform_indices = @transform_1, window_bounds = array<i64: 4, 32>}, {pipeline_mode = #tpu.pipeline_mode<synchronous>, transform_indices = @transform_2, window_bounds = array<i64: 1, 32>}, {pipeline_mode = #tpu.pipeline_mode<synchronous>, transform_indices = @transform_3, window_bounds = array<i64: 32, 32>}, {pipeline_mode = #tpu.pipeline_mode<synchronous>, transform_indices = @transform_4, window_bounds = array<i64: 1, 32>}, {pipeline_mode = #tpu.pipeline_mode<synchronous>, transform_indices = @transform_5, window_bounds = array<i64: 32, 2>}, {pipeline_mode = #tpu.pipeline_mode<synchronous>, transform_indices = @transform_6, window_bounds = array<i64: 1, 2>}, {transform_indices = @transform_7, window_bounds = array<i64: 256, 2>}]} {
    %c0 = arith.constant 0 : index
    %c0_0 = arith.constant 0 : index
    %0 = vector.load %arg1[%c0, %c0_0] : memref<256x4xf32, #tpu.memory_space<vmem>>, vector<256x4xf32>
    %c0_1 = arith.constant 0 : index
    %c0_2 = arith.constant 0 : index
    %1 = vector.load %arg2[%c0_1, %c0_2] : memref<4x32xf32, #tpu.memory_space<vmem>>, vector<4x32xf32>
    %2 = vector.extract_strided_slice %0 {offsets = [0, 0], sizes = [256, 1], strides = [1, 1]} : vector<256x4xf32> to vector<256x1xf32>
    %3 = vector.extract_strided_slice %1 {offsets = [0, 0], sizes = [1, 32], strides = [1, 1]} : vector<4x32xf32> to vector<1x32xf32>
    %4 = vector.broadcast %2 : vector<256x1xf32> to vector<256x32xf32>
    %5 = vector.broadcast %3 : vector<1x32xf32> to vector<256x32xf32>
    %6 = arith.mulf %4, %5 : vector<256x32xf32>
    %7 = vector.extract_strided_slice %0 {offsets = [0, 1], sizes = [256, 1], strides = [1, 1]} : vector<256x4xf32> to vector<256x1xf32>
    %8 = vector.extract_strided_slice %1 {offsets = [1, 0], sizes = [1, 32], strides = [1, 1]} : vector<4x32xf32> to vector<1x32xf32>
    %9 = vector.broadcast %7 : vector<256x1xf32> to vector<256x32xf32>
    %10 = vector.broadcast %8 : vector<1x32xf32> to vector<256x32xf32>
    %11 = arith.mulf %9, %10 : vector<256x32xf32>
    %12 = arith.addf %6, %11 : vector<256x32xf32>
    %13 = vector.extract_strided_slice %0 {offsets = [0, 2], sizes = [256, 1], strides = [1, 1]} : vector<256x4xf32> to vector<256x1xf32>
    %14 = vector.extract_strided_slice %1 {offsets = [2, 0], sizes = [1, 32], strides = [1, 1]} : vector<4x32xf32> to vector<1x32xf32>
    %15 = vector.broadcast %13 : vector<256x1xf32> to vector<256x32xf32>
    %16 = vector.broadcast %14 : vector<1x32xf32> to vector<256x32xf32>
    %17 = arith.mulf %15, %16 : vector<256x32xf32>
    %18 = arith.addf %12, %17 : vector<256x32xf32>
    %19 = vector.extract_strided_slice %0 {offsets = [0, 3], sizes = [256, 1], strides = [1, 1]} : vector<256x4xf32> to vector<256x1xf32>
    %20 = vector.extract_strided_slice %1 {offsets = [3, 0], sizes = [1, 32], strides = [1, 1]} : vector<4x32xf32> to vector<1x32xf32>
    %21 = vector.broadcast %19 : vector<256x1xf32> to vector<256x32xf32>
    %22 = vector.broadcast %20 : vector<1x32xf32> to vector<256x32xf32>
    %23 = arith.mulf %21, %22 : vector<256x32xf32>
    %24 = arith.addf %18, %23 : vector<256x32xf32>
    %c0_3 = arith.constant 0 : index
    %c0_4 = arith.constant 0 : index
    %25 = vector.load %arg3[%c0_3, %c0_4] : memref<1x32xf32, #tpu.memory_space<vmem>>, vector<1x32xf32>
    %26 = vector.broadcast %25 : vector<1x32xf32> to vector<256x32xf32>
    %27 = arith.addf %24, %26 : vector<256x32xf32>
    %cst = arith.constant 0.000000e+00 : f32
    %28 = vector.broadcast %cst : f32 to vector<256x32xf32>
    %29 = arith.maximumf %27, %28 : vector<256x32xf32>
    %c0_5 = arith.constant 0 : index
    %c0_6 = arith.constant 0 : index
    %30 = vector.load %arg4[%c0_5, %c0_6] : memref<32x32xf32, #tpu.memory_space<vmem>>, vector<32x32xf32>
    %cst_7 = arith.constant dense<0.000000e+00> : vector<256x32xf32>
    %31 = tpu.matmul %29, %30, %cst_7 {dimension_numbers = #tpu.dot_dimension_numbers<[1], [0], [0], [1], [0, 0, 1, 1], [], []>} : vector<256x32xf32>, vector<32x32xf32>, vector<256x32xf32> -> vector<256x32xf32>
    %c0_8 = arith.constant 0 : index
    %c0_9 = arith.constant 0 : index
    %32 = vector.load %arg5[%c0_8, %c0_9] : memref<1x32xf32, #tpu.memory_space<vmem>>, vector<1x32xf32>
    %33 = vector.broadcast %32 : vector<1x32xf32> to vector<256x32xf32>
    %34 = arith.addf %31, %33 : vector<256x32xf32>
    %cst_10 = arith.constant 0.000000e+00 : f32
    %35 = vector.broadcast %cst_10 : f32 to vector<256x32xf32>
    %36 = arith.maximumf %34, %35 : vector<256x32xf32>
    %c0_11 = arith.constant 0 : index
    %c0_12 = arith.constant 0 : index
    %37 = vector.load %arg6[%c0_11, %c0_12] : memref<32x2xf32, #tpu.memory_space<vmem>>, vector<32x2xf32>
    %cst_13 = arith.constant dense<0.000000e+00> : vector<256x2xf32>
    %38 = tpu.matmul %36, %37, %cst_13 {dimension_numbers = #tpu.dot_dimension_numbers<[1], [0], [0], [1], [0, 0, 1, 1], [], []>} : vector<256x32xf32>, vector<32x2xf32>, vector<256x2xf32> -> vector<256x2xf32>
    %c0_14 = arith.constant 0 : index
    %c0_15 = arith.constant 0 : index
    %39 = vector.load %arg7[%c0_14, %c0_15] : memref<1x2xf32, #tpu.memory_space<vmem>>, vector<1x2xf32>
    %40 = vector.broadcast %39 : vector<1x2xf32> to vector<256x2xf32>
    %41 = arith.addf %38, %40 : vector<256x2xf32>
    %42 = math.tanh %41 : vector<256x2xf32>
    %cst_16 = arith.constant 2.000000e+01 : f32
    %43 = vector.broadcast %cst_16 : f32 to vector<256x2xf32>
    %44 = arith.mulf %43, %42 : vector<256x2xf32>
    %c0_17 = arith.constant 0 : index
    %c0_18 = arith.constant 0 : index
    %45 = vector.load %arg8[%c0_17, %c0_18] : memref<256x2xf32, #tpu.memory_space<vmem>>, vector<256x2xf32>
    tpu.vector_store %arg8[%c0_17, %c0_18], %44 {strides = array<i32>} : memref<256x2xf32, #tpu.memory_space<vmem>>, vector<256x2xf32>,
    return
  }
  func.func @transform_0(%arg0: i32) -> (i32, i32) {
    %c0_i32 = arith.constant 0 : i32
    %c0_i32_0 = arith.constant 0 : i32
    return %arg0, %c0_i32 : i32, i32
  }
  func.func @transform_1(%arg0: i32) -> (i32, i32) {
    %c0_i32 = arith.constant 0 : i32
    %c0_i32_0 = arith.constant 0 : i32
    %c0_i32_1 = arith.constant 0 : i32
    return %c0_i32, %c0_i32_0 : i32, i32
  }
  func.func @transform_2(%arg0: i32) -> (i32, i32) {
    %c0_i32 = arith.constant 0 : i32
    %c0_i32_0 = arith.constant 0 : i32
    %c0_i32_1 = arith.constant 0 : i32
    return %c0_i32, %c0_i32_0 : i32, i32
  }
  func.func @transform_3(%arg0: i32) -> (i32, i32) {
    %c0_i32 = arith.constant 0 : i32
    %c0_i32_0 = arith.constant 0 : i32
    %c0_i32_1 = arith.constant 0 : i32
    return %c0_i32, %c0_i32_0 : i32, i32
  }
  func.func @transform_4(%arg0: i32) -> (i32, i32) {
    %c0_i32 = arith.constant 0 : i32
    %c0_i32_0 = arith.constant 0 : i32
    %c0_i32_1 = arith.constant 0 : i32
    return %c0_i32, %c0_i32_0 : i32, i32
  }
  func.func @transform_5(%arg0: i32) -> (i32, i32) {
    %c0_i32 = arith.constant 0 : i32
    %c0_i32_0 = arith.constant 0 : i32
    %c0_i32_1 = arith.constant 0 : i32
    return %c0_i32, %c0_i32_0 : i32, i32
  }
  func.func @transform_6(%arg0: i32) -> (i32, i32) {
    %c0_i32 = arith.constant 0 : i32
    %c0_i32_0 = arith.constant 0 : i32
    %c0_i32_1 = arith.constant 0 : i32
    return %c0_i32, %c0_i32_0 : i32, i32
  }
  func.func @transform_7(%arg0: i32) -> (i32, i32) {
    %c0_i32 = arith.constant 0 : i32
    %c0_i32_0 = arith.constant 0 : i32
    return %arg0, %c0_i32 : i32, i32
  }
}

</mosaic_0001>

<llo_original>
// kernel: tpu_custom_call.1
$region0: #{tpu_custom_call.1}
  #allocation0 [shape = 'u32[]', space=smem, size = 0x4, offset = 0x4, fixed_abs, tag = 'smem constant byte address 0x4 - core index']
  #allocation1 [shape = 'u32[72,128]{1,0:T(1,128)}', space=vmem, size = 0x9000, scoped, tag = 'internal scratch']
  %s0 = inlined_call_operand.vmem [shape: f32[256,4], index: 0, kind: input, shape index: {}]
  %s1 = inlined_call_operand.vmem [shape: f32[4,32], index: 1, kind: input, shape index: {}]
  %s2 = inlined_call_operand.vmem [shape: f32[1,32], index: 2, kind: input, shape index: {}]
  %s3 = inlined_call_operand.vmem [shape: f32[32,32], index: 3, kind: input, shape index: {}]
  %s4 = inlined_call_operand.vmem [shape: f32[1,32], index: 4, kind: input, shape index: {}]
  %s5 = inlined_call_operand.vmem [shape: f32[32,2], index: 5, kind: input, shape index: {}]
  %s6 = inlined_call_operand.vmem [shape: f32[1,2], index: 6, kind: input, shape index: {}]
  %s7 = inlined_call_operand.vmem [shape: f32[256,2], index: 7, kind: output, shape index: {}]
  %s8 = sld [smem:[#allocation0]]
  $region38: #{tpu_custom_call.1} parent=0
    _
  %s10 = ssub.s32 1, %s8
  %s11 = scalar_select 0, %s10, %s8
  // Predicated region
  $region2: #{tpu_custom_call.1} parent=0 // pred_check
    _
  $region3: #{tpu_custom_call.1} parent=0 // pred_check_branch
    %13 = sbr.rel (0) target = $region5
  $region4: #{tpu_custom_call.1} parent=0 // pred_region
    _
  $region5: #{tpu_custom_call.1} parent=0 // pred_fallthru
    _
  // Predicated region
  $region6: #{tpu_custom_call.1} parent=0 // pred_check
    _
  $region7: #{tpu_custom_call.1} parent=0 // pred_check_branch
    %15 = sbr.rel (0) target = $region9
  $region8: #{tpu_custom_call.1} parent=0 // pred_region
    _
  $region9: #{tpu_custom_call.1} parent=0 // pred_fallthru
    _
  // Predicated region
  $region10: #{tpu_custom_call.1} parent=0 // pred_check
    _
  $region11: #{tpu_custom_call.1} parent=0 // pred_check_branch
    %17 = sbr.rel (0) target = $region13
  $region12: #{tpu_custom_call.1} parent=0 // pred_region
    _
  $region13: #{tpu_custom_call.1} parent=0 // pred_fallthru
    _
  // Predicated region
  $region14: #{tpu_custom_call.1} parent=0 // pred_check
    _
  $region15: #{tpu_custom_call.1} parent=0 // pred_check_branch
    %19 = sbr.rel (0) target = $region17
  $region16: #{tpu_custom_call.1} parent=0 // pred_region
    _
  $region17: #{tpu_custom_call.1} parent=0 // pred_fallthru
    _
  // Predicated region
  $region18: #{tpu_custom_call.1} parent=0 // pred_check
    _
  $region19: #{tpu_custom_call.1} parent=0 // pred_check_branch
    %21 = sbr.rel (0) target = $region21
  $region20: #{tpu_custom_call.1} parent=0 // pred_region
    _
  $region21: #{tpu_custom_call.1} parent=0 // pred_fallthru
    _
  // Predicated region
  $region22: #{tpu_custom_call.1} parent=0 // pred_check
    _
  $region23: #{tpu_custom_call.1} parent=0 // pred_check_branch
    %23 = sbr.rel (0) target = $region25
  $region24: #{tpu_custom_call.1} parent=0 // pred_region
    _
  $region25: #{tpu_custom_call.1} parent=0 // pred_fallthru
    _
  // Predicated region
  $region26: #{tpu_custom_call.1} parent=0 // pred_check
    _
  $region27: #{tpu_custom_call.1} parent=0 // pred_check_branch
    %25 = sbr.rel (0) target = $region29
  $region28: #{tpu_custom_call.1} parent=0 // pred_region
    _
  $region29: #{tpu_custom_call.1} parent=0 // pred_fallthru
    _
  %v26 = vld [vmem:[%s0] sm:$0xff]
  %v27 = vld [vmem:[%s0 + $0x8] sm:$0xff]
  %v28 = vld [vmem:[%s0 + $0x10] sm:$0xff]
  %v29 = vld [vmem:[%s0 + $0x18] sm:$0xff]
  %v30 = vld [vmem:[%s0 + $0x20] sm:$0xff]
  %v31 = vld [vmem:[%s0 + $0x28] sm:$0xff]
  %v32 = vld [vmem:[%s0 + $0x30] sm:$0xff]
  %v33 = vld [vmem:[%s0 + $0x38] sm:$0xff]
  %v34 = vld [vmem:[%s0 + $0x40] sm:$0xff]
  %v35 = vld [vmem:[%s0 + $0x48] sm:$0xff]
  %v36 = vld [vmem:[%s0 + $0x50] sm:$0xff]
  %v37 = vld [vmem:[%s0 + $0x58] sm:$0xff]
  %v38 = vld [vmem:[%s0 + $0x60] sm:$0xff]
  %v39 = vld [vmem:[%s0 + $0x68] sm:$0xff]
  %v40 = vld [vmem:[%s0 + $0x70] sm:$0xff]
  %v41 = vld [vmem:[%s0 + $0x78] sm:$0xff]
  %v42 = vld [vmem:[%s0 + $0x80] sm:$0xff]
  %v43 = vld [vmem:[%s0 + $0x88] sm:$0xff]
  %v44 = vld [vmem:[%s0 + $0x90] sm:$0xff]
  %v45 = vld [vmem:[%s0 + $0x98] sm:$0xff]
  %v46 = vld [vmem:[%s0 + $0xa0] sm:$0xff]
  %v47 = vld [vmem:[%s0 + $0xa8] sm:$0xff]
  %v48 = vld [vmem:[%s0 + $0xb0] sm:$0xff]
  %v49 = vld [vmem:[%s0 + $0xb8] sm:$0xff]
  %v50 = vld [vmem:[%s0 + $0xc0] sm:$0xff]
  %v51 = vld [vmem:[%s0 + $0xc8] sm:$0xff]
  %v52 = vld [vmem:[%s0 + $0xd0] sm:$0xff]
  %v53 = vld [vmem:[%s0 + $0xd8] sm:$0xff]
  %v54 = vld [vmem:[%s0 + $0xe0] sm:$0xff]
  %v55 = vld [vmem:[%s0 + $0xe8] sm:$0xff]
  %v56 = vld [vmem:[%s0 + $0xf0] sm:$0xff]
  %v57 = vld [vmem:[%s0 + $0xf8] sm:$0xff]
  %v58 = vld [vmem:[%s1] sm:$0xf]
  %60 = vset.pattern.permute.xlu0 0
  %61 = vperm.xlu0 %60, %v26
  %v62 = vpop.permute.xlu0 %61
  %65 = vset.pattern.permute.xlu0 0
  %66 = vperm.xlu0 %65, %v27
  %v67 = vpop.permute.xlu0 %66
  %70 = vset.pattern.permute.xlu0 0
  %71 = vperm.xlu0 %70, %v28
  %v72 = vpop.permute.xlu0 %71
  %75 = vset.pattern.permute.xlu0 0
  %76 = vperm.xlu0 %75, %v29
  %v77 = vpop.permute.xlu0 %76
  %80 = vset.pattern.permute.xlu0 0
  %81 = vperm.xlu0 %80, %v30
  %v82 = vpop.permute.xlu0 %81
  %85 = vset.pattern.permute.xlu0 0
  %86 = vperm.xlu0 %85, %v31
  %v87 = vpop.permute.xlu0 %86
  %90 = vset.pattern.permute.xlu0 0
  %91 = vperm.xlu0 %90, %v32
  %v92 = vpop.permute.xlu0 %91
  %95 = vset.pattern.permute.xlu0 0
  %96 = vperm.xlu0 %95, %v33
  %v97 = vpop.permute.xlu0 %96
  %100 = vset.pattern.permute.xlu0 0
  %101 = vperm.xlu0 %100, %v34
  %v102 = vpop.permute.xlu0 %101
  %105 = vset.pattern.permute.xlu0 0
  %106 = vperm.xlu0 %105, %v35
  %v107 = vpop.permute.xlu0 %106
  %110 = vset.pattern.permute.xlu0 0
  %111 = vperm.xlu0 %110, %v36
  %v112 = vpop.permute.xlu0 %111
  %115 = vset.pattern.permute.xlu0 0
  %116 = vperm.xlu0 %115, %v37
  %v117 = vpop.permute.xlu0 %116
  %120 = vset.pattern.permute.xlu0 0
  %121 = vperm.xlu0 %120, %v38
  %v122 = vpop.permute.xlu0 %121
  %125 = vset.pattern.permute.xlu0 0
  %126 = vperm.xlu0 %125, %v39
  %v127 = vpop.permute.xlu0 %126
  %130 = vset.pattern.permute.xlu0 0
  %131 = vperm.xlu0 %130, %v40
  %v132 = vpop.permute.xlu0 %131
  %135 = vset.pattern.permute.xlu0 0
  %136 = vperm.xlu0 %135, %v41
  %v137 = vpop.permute.xlu0 %136
  %140 = vset.pattern.permute.xlu0 0
  %141 = vperm.xlu0 %140, %v42
  %v142 = vpop.permute.xlu0 %141
  %145 = vset.pattern.permute.xlu0 0
  %146 = vperm.xlu0 %145, %v43
  %v147 = vpop.permute.xlu0 %146
  %150 = vset.pattern.permute.xlu0 0
  %151 = vperm.xlu0 %150, %v44
  %v152 = vpop.permute.xlu0 %151
  %155 = vset.pattern.permute.xlu0 0
  %156 = vperm.xlu0 %155, %v45
  %v157 = vpop.permute.xlu0 %156
  %160 = vset.pattern.permute.xlu0 0
  %161 = vperm.xlu0 %160, %v46
  %v162 = vpop.permute.xlu0 %161
  %165 = vset.pattern.permute.xlu0 0
  %166 = vperm.xlu0 %165, %v47
  %v167 = vpop.permute.xlu0 %166
  %170 = vset.pattern.permute.xlu0 0
  %171 = vperm.xlu0 %170, %v48
  %v172 = vpop.permute.xlu0 %171
  %175 = vset.pattern.permute.xlu0 0
  %176 = vperm.xlu0 %175, %v49
  %v177 = vpop.permute.xlu0 %176
  %180 = vset.pattern.permute.xlu0 0
  %181 = vperm.xlu0 %180, %v50
  %v182 = vpop.permute.xlu0 %181
  %185 = vset.pattern.permute.xlu0 0
  %186 = vperm.xlu0 %185, %v51
  %v187 = vpop.permute.xlu0 %186
  %190 = vset.pattern.permute.xlu0 0
  %191 = vperm.xlu0 %190, %v52
  %v192 = vpop.permute.xlu0 %191
  %195 = vset.pattern.permute.xlu0 0
  %196 = vperm.xlu0 %195, %v53
  %v197 = vpop.permute.xlu0 %196
  %200 = vset.pattern.permute.xlu0 0
  %201 = vperm.xlu0 %200, %v54
  %v202 = vpop.permute.xlu0 %201
  %205 = vset.pattern.permute.xlu0 0
  %206 = vperm.xlu0 %205, %v55
  %v207 = vpop.permute.xlu0 %206
  %210 = vset.pattern.permute.xlu0 0
  %211 = vperm.xlu0 %210, %v56
  %v212 = vpop.permute.xlu0 %211
  %215 = vset.pattern.permute.xlu0 0
  %216 = vperm.xlu0 %215, %v57
  %v217 = vpop.permute.xlu0 %216
  %v219 = vperm.slane %v58, 0
  %v220 = vmul.f32 %v62, %v219
  %v221 = vmul.f32 %v67, %v219
  %v222 = vmul.f32 %v72, %v219
  %v223 = vmul.f32 %v77, %v219
  %v224 = vmul.f32 %v82, %v219
  %v225 = vmul.f32 %v87, %v219
  %v226 = vmul.f32 %v92, %v219
  %v227 = vmul.f32 %v97, %v219
  %v228 = vmul.f32 %v102, %v219
  %v229 = vmul.f32 %v107, %v219
  %v230 = vmul.f32 %v112, %v219
  %v231 = vmul.f32 %v117, %v219
  %v232 = vmul.f32 %v122, %v219
  %v233 = vmul.f32 %v127, %v219
  %v234 = vmul.f32 %v132, %v219
  %v235 = vmul.f32 %v137, %v219
  %v236 = vmul.f32 %v142, %v219
  %v237 = vmul.f32 %v147, %v219
  %v238 = vmul.f32 %v152, %v219
  %v239 = vmul.f32 %v157, %v219
  %v240 = vmul.f32 %v162, %v219
  %v241 = vmul.f32 %v167, %v219
  %v242 = vmul.f32 %v172, %v219
  %v243 = vmul.f32 %v177, %v219
  %v244 = vmul.f32 %v182, %v219
  %v245 = vmul.f32 %v187, %v219
  %v246 = vmul.f32 %v192, %v219
  %v247 = vmul.f32 %v197, %v219
  %v248 = vmul.f32 %v202, %v219
  %v249 = vmul.f32 %v207, %v219
  %v250 = vmul.f32 %v212, %v219
  %v251 = vmul.f32 %v217, %v219
  %252 = vset.pattern.permute.xlu0 1
  %253 = vperm.xlu0 %252, %v26
  %v254 = vpop.permute.xlu0 %253
  %256 = vset.pattern.permute.xlu0 1
  %257 = vperm.xlu0 %256, %v27
  %v258 = vpop.permute.xlu0 %257
  %260 = vset.pattern.permute.xlu0 1
  %261 = vperm.xlu0 %260, %v28
  %v262 = vpop.permute.xlu0 %261
  %264 = vset.pattern.permute.xlu0 1
  %265 = vperm.xlu0 %264, %v29
  %v266 = vpop.permute.xlu0 %265
  %268 = vset.pattern.permute.xlu0 1
  %269 = vperm.xlu0 %268, %v30
  %v270 = vpop.permute.xlu0 %269
  %272 = vset.pattern.permute.xlu0 1
  %273 = vperm.xlu0 %272, %v31
  %v274 = vpop.permute.xlu0 %273
  %276 = vset.pattern.permute.xlu0 1
  %277 = vperm.xlu0 %276, %v32
  %v278 = vpop.permute.xlu0 %277
  %280 = vset.pattern.permute.xlu0 1
  %281 = vperm.xlu0 %280, %v33
  %v282 = vpop.permute.xlu0 %281
  %284 = vset.pattern.permute.xlu0 1
  %285 = vperm.xlu0 %284, %v34
  %v286 = vpop.permute.xlu0 %285
  %288 = vset.pattern.permute.xlu0 1
  %289 = vperm.xlu0 %288, %v35
  %v290 = vpop.permute.xlu0 %289
  %292 = vset.pattern.permute.xlu0 1
  %293 = vperm.xlu0 %292, %v36
  %v294 = vpop.permute.xlu0 %293
  %296 = vset.pattern.permute.xlu0 1
  %297 = vperm.xlu0 %296, %v37
  %v298 = vpop.permute.xlu0 %297
  %300 = vset.pattern.permute.xlu0 1
  %301 = vperm.xlu0 %300, %v38
  %v302 = vpop.permute.xlu0 %301
  %304 = vset.pattern.permute.xlu0 1
  %305 = vperm.xlu0 %304, %v39
  %v306 = vpop.permute.xlu0 %305
  %308 = vset.pattern.permute.xlu0 1
  %309 = vperm.xlu0 %308, %v40
  %v310 = vpop.permute.xlu0 %309
  %312 = vset.pattern.permute.xlu0 1
  %313 = vperm.xlu0 %312, %v41
  %v314 = vpop.permute.xlu0 %313
  %316 = vset.pattern.permute.xlu0 1
  %317 = vperm.xlu0 %316, %v42
  %v318 = vpop.permute.xlu0 %317
  %320 = vset.pattern.permute.xlu0 1
  %321 = vperm.xlu0 %320, %v43
  %v322 = vpop.permute.xlu0 %321
  %324 = vset.pattern.permute.xlu0 1
  %325 = vperm.xlu0 %324, %v44
  %v326 = vpop.permute.xlu0 %325
  %328 = vset.pattern.permute.xlu0 1
  %329 = vperm.xlu0 %328, %v45
  %v330 = vpop.permute.xlu0 %329
  %332 = vset.pattern.permute.xlu0 1
  %333 = vperm.xlu0 %332, %v46
  %v334 = vpop.permute.xlu0 %333
  %336 = vset.pattern.permute.xlu0 1
  %337 = vperm.xlu0 %336, %v47
  %v338 = vpop.permute.xlu0 %337
  %340 = vset.pattern.permute.xlu0 1
  %341 = vperm.xlu0 %340, %v48
  %v342 = vpop.permute.xlu0 %341
  %344 = vset.pattern.permute.xlu0 1
  %345 = vperm.xlu0 %344, %v49
  %v346 = vpop.permute.xlu0 %345
  %348 = vset.pattern.permute.xlu0 1
  %349 = vperm.xlu0 %348, %v50
  %v350 = vpop.permute.xlu0 %349
  %352 = vset.pattern.permute.xlu0 1
  %353 = vperm.xlu0 %352, %v51
  %v354 = vpop.permute.xlu0 %353
  %356 = vset.pattern.permute.xlu0 1
  %357 = vperm.xlu0 %356, %v52
  %v358 = vpop.permute.xlu0 %357
  %360 = vset.pattern.permute.xlu0 1
  %361 = vperm.xlu0 %360, %v53
  %v362 = vpop.permute.xlu0 %361
  %364 = vset.pattern.permute.xlu0 1
  %365 = vperm.xlu0 %364, %v54
  %v366 = vpop.permute.xlu0 %365
  %368 = vset.pattern.permute.xlu0 1
  %369 = vperm.xlu0 %368, %v55
  %v370 = vpop.permute.xlu0 %369
  %372 = vset.pattern.permute.xlu0 1
  %373 = vperm.xlu0 %372, %v56
  %v374 = vpop.permute.xlu0 %373
  %376 = vset.pattern.permute.xlu0 1
  %377 = vperm.xlu0 %376, %v57
  %v378 = vpop.permute.xlu0 %377
  %v380 = vperm.slane %v58, 1
  %v381 = vmul.f32 %v254, %v380
  %v382 = vmul.f32 %v258, %v380
  %v383 = vmul.f32 %v262, %v380
  %v384 = vmul.f32 %v266, %v380
  %v385 = vmul.f32 %v270, %v380
  %v386 = vmul.f32 %v274, %v380
  %v387 = vmul.f32 %v278, %v380
  %v388 = vmul.f32 %v282, %v380
  %v389 = vmul.f32 %v286, %v380
  %v390 = vmul.f32 %v290, %v380
  %v391 = vmul.f32 %v294, %v380
  %v392 = vmul.f32 %v298, %v380
  %v393 = vmul.f32 %v302, %v380
  %v394 = vmul.f32 %v306, %v380
  %v395 = vmul.f32 %v310, %v380
  %v396 = vmul.f32 %v314, %v380
  %v397 = vmul.f32 %v318, %v380
  %v398 = vmul.f32 %v322, %v380
  %v399 = vmul.f32 %v326, %v380
  %v400 = vmul.f32 %v330, %v380
  %v401 = vmul.f32 %v334, %v380
  %v402 = vmul.f32 %v338, %v380
  %v403 = vmul.f32 %v342, %v380
  %v404 = vmul.f32 %v346, %v380
  %v405 = vmul.f32 %v350, %v380
  %v406 = vmul.f32 %v354, %v380
  %v407 = vmul.f32 %v358, %v380
  %v408 = vmul.f32 %v362, %v380
  %v409 = vmul.f32 %v366, %v380
  %v410 = vmul.f32 %v370, %v380
  %v411 = vmul.f32 %v374, %v380
  %v412 = vmul.f32 %v378, %v380
  %v413 = vadd.f32 %v220, %v381
  %v414 = vadd.f32 %v221, %v382
  %v415 = vadd.f32 %v222, %v383
  %v416 = vadd.f32 %v223, %v384
  %v417 = vadd.f32 %v224, %v385
  %v418 = vadd.f32 %v225, %v386
  %v419 = vadd.f32 %v226, %v387
  %v420 = vadd.f32 %v227, %v388
  %v421 = vadd.f32 %v228, %v389
  %v422 = vadd.f32 %v229, %v390
  %v423 = vadd.f32 %v230, %v391
  %v424 = vadd.f32 %v231, %v392
  %v425 = vadd.f32 %v232, %v393
  %v426 = vadd.f32 %v233, %v394
  %v427 = vadd.f32 %v234, %v395
  %v428 = vadd.f32 %v235, %v396
  %v429 = vadd.f32 %v236, %v397
  %v430 = vadd.f32 %v237, %v398
  %v431 = vadd.f32 %v238, %v399
  %v432 = vadd.f32 %v239, %v400
  %v433 = vadd.f32 %v240, %v401
  %v434 = vadd.f32 %v241, %v402
  %v435 = vadd.f32 %v242, %v403
  %v436 = vadd.f32 %v243, %v404
  %v437 = vadd.f32 %v244, %v405
  %v438 = vadd.f32 %v245, %v406
  %v439 = vadd.f32 %v246, %v407
  %v440 = vadd.f32 %v247, %v408
  %v441 = vadd.f32 %v248, %v409
  %v442 = vadd.f32 %v249, %v410
  %v443 = vadd.f32 %v250, %v411
  %v444 = vadd.f32 %v251, %v412
  %445 = vset.pattern.permute.xlu0 2
  %446 = vperm.xlu0 %445, %v26
  %v447 = vpop.permute.xlu0 %446
  %449 = vset.pattern.permute.xlu0 2
  %450 = vperm.xlu0 %449, %v27
  %v451 = vpop.permute.xlu0 %450
  %453 = vset.pattern.permute.xlu0 2
  %454 = vperm.xlu0 %453, %v28
  %v455 = vpop.permute.xlu0 %454
  %457 = vset.pattern.permute.xlu0 2
  %458 = vperm.xlu0 %457, %v29
  %v459 = vpop.permute.xlu0 %458
  %461 = vset.pattern.permute.xlu0 2
  %462 = vperm.xlu0 %461, %v30
  %v463 = vpop.permute.xlu0 %462
  %465 = vset.pattern.permute.xlu0 2
  %466 = vperm.xlu0 %465, %v31
  %v467 = vpop.permute.xlu0 %466
  %469 = vset.pattern.permute.xlu0 2
  %470 = vperm.xlu0 %469, %v32
  %v471 = vpop.permute.xlu0 %470
  %473 = vset.pattern.permute.xlu0 2
  %474 = vperm.xlu0 %473, %v33
  %v475 = vpop.permute.xlu0 %474
  %477 = vset.pattern.permute.xlu0 2
  %478 = vperm.xlu0 %477, %v34
  %v479 = vpop.permute.xlu0 %478
  %481 = vset.pattern.permute.xlu0 2
  %482 = vperm.xlu0 %481, %v35
  %v483 = vpop.permute.xlu0 %482
  %485 = vset.pattern.permute.xlu0 2
  %486 = vperm.xlu0 %485, %v36
  %v487 = vpop.permute.xlu0 %486
  %489 = vset.pattern.permute.xlu0 2
  %490 = vperm.xlu0 %489, %v37
  %v491 = vpop.permute.xlu0 %490
  %493 = vset.pattern.permute.xlu0 2
  %494 = vperm.xlu0 %493, %v38
  %v495 = vpop.permute.xlu0 %494
  %497 = vset.pattern.permute.xlu0 2
  %498 = vperm.xlu0 %497, %v39
  %v499 = vpop.permute.xlu0 %498
  %501 = vset.pattern.permute.xlu0 2
  %502 = vperm.xlu0 %501, %v40
  %v503 = vpop.permute.xlu0 %502
  %505 = vset.pattern.permute.xlu0 2
  %506 = vperm.xlu0 %505, %v41
  %v507 = vpop.permute.xlu0 %506
  %509 = vset.pattern.permute.xlu0 2
  %510 = vperm.xlu0 %509, %v42
  %v511 = vpop.permute.xlu0 %510
  %513 = vset.pattern.permute.xlu0 2
  %514 = vperm.xlu0 %513, %v43
  %v515 = vpop.permute.xlu0 %514
  %517 = vset.pattern.permute.xlu0 2
  %518 = vperm.xlu0 %517, %v44
  %v519 = vpop.permute.xlu0 %518
  %521 = vset.pattern.permute.xlu0 2
  %522 = vperm.xlu0 %521, %v45
  %v523 = vpop.permute.xlu0 %522
  %525 = vset.pattern.permute.xlu0 2
  %526 = vperm.xlu0 %525, %v46
  %v527 = vpop.permute.xlu0 %526
  %529 = vset.pattern.permute.xlu0 2
  %530 = vperm.xlu0 %529, %v47
  %v531 = vpop.permute.xlu0 %530
  %533 = vset.pattern.permute.xlu0 2
  %534 = vperm.xlu0 %533, %v48
  %v535 = vpop.permute.xlu0 %534
  %537 = vset.pattern.permute.xlu0 2
  %538 = vperm.xlu0 %537, %v49
  %v539 = vpop.permute.xlu0 %538
  %541 = vset.pattern.permute.xlu0 2
  %542 = vperm.xlu0 %541, %v50
  %v543 = vpop.permute.xlu0 %542
  %545 = vset.pattern.permute.xlu0 2
  %546 = vperm.xlu0 %545, %v51
  %v547 = vpop.permute.xlu0 %546
  %549 = vset.pattern.permute.xlu0 2
  %550 = vperm.xlu0 %549, %v52
  %v551 = vpop.permute.xlu0 %550
  %553 = vset.pattern.permute.xlu0 2
  %554 = vperm.xlu0 %553, %v53
  %v555 = vpop.permute.xlu0 %554
  %557 = vset.pattern.permute.xlu0 2
  %558 = vperm.xlu0 %557, %v54
  %v559 = vpop.permute.xlu0 %558
  %561 = vset.pattern.permute.xlu0 2
  %562 = vperm.xlu0 %561, %v55
  %v563 = vpop.permute.xlu0 %562
  %565 = vset.pattern.permute.xlu0 2
  %566 = vperm.xlu0 %565, %v56
  %v567 = vpop.permute.xlu0 %566
  %569 = vset.pattern.permute.xlu0 2
  %570 = vperm.xlu0 %569, %v57
  %v571 = vpop.permute.xlu0 %570
  %v573 = vperm.slane %v58, 2
  %v574 = vmul.f32 %v447, %v573
  %v575 = vmul.f32 %v451, %v573
  %v576 = vmul.f32 %v455, %v573
  %v577 = vmul.f32 %v459, %v573
  %v578 = vmul.f32 %v463, %v573
  %v579 = vmul.f32 %v467, %v573
  %v580 = vmul.f32 %v471, %v573
  %v581 = vmul.f32 %v475, %v573
  %v582 = vmul.f32 %v479, %v573
  %v583 = vmul.f32 %v483, %v573
  %v584 = vmul.f32 %v487, %v573
  %v585 = vmul.f32 %v491, %v573
  %v586 = vmul.f32 %v495, %v573
  %v587 = vmul.f32 %v499, %v573
  %v588 = vmul.f32 %v503, %v573
  %v589 = vmul.f32 %v507, %v573
  %v590 = vmul.f32 %v511, %v573
  %v591 = vmul.f32 %v515, %v573
  %v592 = vmul.f32 %v519, %v573
  %v593 = vmul.f32 %v523, %v573
  %v594 = vmul.f32 %v527, %v573
  %v595 = vmul.f32 %v531, %v573
  %v596 = vmul.f32 %v535, %v573
  %v597 = vmul.f32 %v539, %v573
  %v598 = vmul.f32 %v543, %v573
  %v599 = vmul.f32 %v547, %v573
  %v600 = vmul.f32 %v551, %v573
  %v601 = vmul.f32 %v555, %v573
  %v602 = vmul.f32 %v559, %v573
  %v603 = vmul.f32 %v563, %v573
  %v604 = vmul.f32 %v567, %v573
  %v605 = vmul.f32 %v571, %v573
  %v606 = vadd.f32 %v413, %v574
  %v607 = vadd.f32 %v414, %v575
  %v608 = vadd.f32 %v415, %v576
  %v609 = vadd.f32 %v416, %v577
  %v610 = vadd.f32 %v417, %v578
  %v611 = vadd.f32 %v418, %v579
  %v612 = vadd.f32 %v419, %v580
  %v613 = vadd.f32 %v420, %v581
  %v614 = vadd.f32 %v421, %v582
  %v615 = vadd.f32 %v422, %v583
  %v616 = vadd.f32 %v423, %v584
  %v617 = vadd.f32 %v424, %v585
  %v618 = vadd.f32 %v425, %v586
  %v619 = vadd.f32 %v426, %v587
  %v620 = vadd.f32 %v427, %v588
  %v621 = vadd.f32 %v428, %v589
  %v622 = vadd.f32 %v429, %v590
  %v623 = vadd.f32 %v430, %v591
  %v624 = vadd.f32 %v431, %v592
  %v625 = vadd.f32 %v432, %v593
  %v626 = vadd.f32 %v433, %v594
  %v627 = vadd.f32 %v434, %v595
  %v628 = vadd.f32 %v435, %v596
  %v629 = vadd.f32 %v436, %v597
  %v630 = vadd.f32 %v437, %v598
  %v631 = vadd.f32 %v438, %v599
  %v632 = vadd.f32 %v439, %v600
  %v633 = vadd.f32 %v440, %v601
  %v634 = vadd.f32 %v441, %v602
  %v635 = vadd.f32 %v442, %v603
  %v636 = vadd.f32 %v443, %v604
  %v637 = vadd.f32 %v444, %v605
  %638 = vset.pattern.permute.xlu0 3
  %639 = vperm.xlu0 %638, %v26
  %v640 = vpop.permute.xlu0 %639
  %642 = vset.pattern.permute.xlu0 3
  %643 = vperm.xlu0 %642, %v27
  %v644 = vpop.permute.xlu0 %643
  %646 = vset.pattern.permute.xlu0 3
  %647 = vperm.xlu0 %646, %v28
  %v648 = vpop.permute.xlu0 %647
  %650 = vset.pattern.permute.xlu0 3
  %651 = vperm.xlu0 %650, %v29
  %v652 = vpop.permute.xlu0 %651
  %654 = vset.pattern.permute.xlu0 3
  %655 = vperm.xlu0 %654, %v30
  %v656 = vpop.permute.xlu0 %655
  %658 = vset.pattern.permute.xlu0 3
  %659 = vperm.xlu0 %658, %v31
  %v660 = vpop.permute.xlu0 %659
  %662 = vset.pattern.permute.xlu0 3
  %663 = vperm.xlu0 %662, %v32
  %v664 = vpop.permute.xlu0 %663
  %666 = vset.pattern.permute.xlu0 3
  %667 = vperm.xlu0 %666, %v33
  %v668 = vpop.permute.xlu0 %667
  %670 = vset.pattern.permute.xlu0 3
  %671 = vperm.xlu0 %670, %v34
  %v672 = vpop.permute.xlu0 %671
  %674 = vset.pattern.permute.xlu0 3
  %675 = vperm.xlu0 %674, %v35
  %v676 = vpop.permute.xlu0 %675
  %678 = vset.pattern.permute.xlu0 3
  %679 = vperm.xlu0 %678, %v36
  %v680 = vpop.permute.xlu0 %679
  %682 = vset.pattern.permute.xlu0 3
  %683 = vperm.xlu0 %682, %v37
  %v684 = vpop.permute.xlu0 %683
  %686 = vset.pattern.permute.xlu0 3
  %687 = vperm.xlu0 %686, %v38
  %v688 = vpop.permute.xlu0 %687
  %690 = vset.pattern.permute.xlu0 3
  %691 = vperm.xlu0 %690, %v39
  %v692 = vpop.permute.xlu0 %691
  %694 = vset.pattern.permute.xlu0 3
  %695 = vperm.xlu0 %694, %v40
  %v696 = vpop.permute.xlu0 %695
  %698 = vset.pattern.permute.xlu0 3
  %699 = vperm.xlu0 %698, %v41
  %v700 = vpop.permute.xlu0 %699
  %702 = vset.pattern.permute.xlu0 3
  %703 = vperm.xlu0 %702, %v42
  %v704 = vpop.permute.xlu0 %703
  %706 = vset.pattern.permute.xlu0 3
  %707 = vperm.xlu0 %706, %v43
  %v708 = vpop.permute.xlu0 %707
  %710 = vset.pattern.permute.xlu0 3
  %711 = vperm.xlu0 %710, %v44
  %v712 = vpop.permute.xlu0 %711
  %714 = vset.pattern.permute.xlu0 3
  %715 = vperm.xlu0 %714, %v45
  %v716 = vpop.permute.xlu0 %715
  %718 = vset.pattern.permute.xlu0 3
  %719 = vperm.xlu0 %718, %v46
  %v720 = vpop.permute.xlu0 %719
  %722 = vset.pattern.permute.xlu0 3
  %723 = vperm.xlu0 %722, %v47
  %v724 = vpop.permute.xlu0 %723
  %726 = vset.pattern.permute.xlu0 3
  %727 = vperm.xlu0 %726, %v48
  %v728 = vpop.permute.xlu0 %727
  %730 = vset.pattern.permute.xlu0 3
  %731 = vperm.xlu0 %730, %v49
  %v732 = vpop.permute.xlu0 %731
  %734 = vset.pattern.permute.xlu0 3
  %735 = vperm.xlu0 %734, %v50
  %v736 = vpop.permute.xlu0 %735
  %738 = vset.pattern.permute.xlu0 3
  %739 = vperm.xlu0 %738, %v51
  %v740 = vpop.permute.xlu0 %739
  %742 = vset.pattern.permute.xlu0 3
  %743 = vperm.xlu0 %742, %v52
  %v744 = vpop.permute.xlu0 %743
  %746 = vset.pattern.permute.xlu0 3
  %747 = vperm.xlu0 %746, %v53
  %v748 = vpop.permute.xlu0 %747
  %750 = vset.pattern.permute.xlu0 3
  %751 = vperm.xlu0 %750, %v54
  %v752 = vpop.permute.xlu0 %751
  %754 = vset.pattern.permute.xlu0 3
  %755 = vperm.xlu0 %754, %v55
  %v756 = vpop.permute.xlu0 %755
  %758 = vset.pattern.permute.xlu0 3
  %759 = vperm.xlu0 %758, %v56
  %v760 = vpop.permute.xlu0 %759
  %762 = vset.pattern.permute.xlu0 3
  %763 = vperm.xlu0 %762, %v57
  %v764 = vpop.permute.xlu0 %763
  %v766 = vperm.slane %v58, 3
  %v767 = vmul.f32 %v640, %v766
  %v768 = vmul.f32 %v644, %v766
  %v769 = vmul.f32 %v648, %v766
  %v770 = vmul.f32 %v652, %v766
  %v771 = vmul.f32 %v656, %v766
  %v772 = vmul.f32 %v660, %v766
  %v773 = vmul.f32 %v664, %v766
  %v774 = vmul.f32 %v668, %v766
  %v775 = vmul.f32 %v672, %v766
  %v776 = vmul.f32 %v676, %v766
  %v777 = vmul.f32 %v680, %v766
  %v778 = vmul.f32 %v684, %v766
  %v779 = vmul.f32 %v688, %v766
  %v780 = vmul.f32 %v692, %v766
  %v781 = vmul.f32 %v696, %v766
  %v782 = vmul.f32 %v700, %v766
  %v783 = vmul.f32 %v704, %v766
  %v784 = vmul.f32 %v708, %v766
  %v785 = vmul.f32 %v712, %v766
  %v786 = vmul.f32 %v716, %v766
  %v787 = vmul.f32 %v720, %v766
  %v788 = vmul.f32 %v724, %v766
  %v789 = vmul.f32 %v728, %v766
  %v790 = vmul.f32 %v732, %v766
  %v791 = vmul.f32 %v736, %v766
  %v792 = vmul.f32 %v740, %v766
  %v793 = vmul.f32 %v744, %v766
  %v794 = vmul.f32 %v748, %v766
  %v795 = vmul.f32 %v752, %v766
  %v796 = vmul.f32 %v756, %v766
  %v797 = vmul.f32 %v760, %v766
  %v798 = vmul.f32 %v764, %v766
  %v799 = vadd.f32 %v606, %v767
  %v800 = vadd.f32 %v607, %v768
  %v801 = vadd.f32 %v608, %v769
  %v802 = vadd.f32 %v609, %v770
  %v803 = vadd.f32 %v610, %v771
  %v804 = vadd.f32 %v611, %v772
  %v805 = vadd.f32 %v612, %v773
  %v806 = vadd.f32 %v613, %v774
  %v807 = vadd.f32 %v614, %v775
  %v808 = vadd.f32 %v615, %v776
  %v809 = vadd.f32 %v616, %v777
  %v810 = vadd.f32 %v617, %v778
  %v811 = vadd.f32 %v618, %v779
  %v812 = vadd.f32 %v619, %v780
  %v813 = vadd.f32 %v620, %v781
  %v814 = vadd.f32 %v621, %v782
  %v815 = vadd.f32 %v622, %v783
  %v816 = vadd.f32 %v623, %v784
  %v817 = vadd.f32 %v624, %v785
  %v818 = vadd.f32 %v625, %v786
  %v819 = vadd.f32 %v626, %v787
  %v820 = vadd.f32 %v627, %v788
  %v821 = vadd.f32 %v628, %v789
  %v822 = vadd.f32 %v629, %v790
  %v823 = vadd.f32 %v630, %v791
  %v824 = vadd.f32 %v631, %v792
  %v825 = vadd.f32 %v632, %v793
  %v826 = vadd.f32 %v633, %v794
  %v827 = vadd.f32 %v634, %v795
  %v828 = vadd.f32 %v635, %v796
  %v829 = vadd.f32 %v636, %v797
  %v830 = vadd.f32 %v637, %v798
  %v831 = vld [vmem:[%s2] sm:$0x1]
  %v833 = vperm.slane %v831, 0
  %v835 = vadd.f32 %v799, %v833
  %v836 = vadd.f32 %v800, %v833
  %v837 = vadd.f32 %v801, %v833
  %v838 = vadd.f32 %v802, %v833
  %v839 = vadd.f32 %v803, %v833
  %v840 = vadd.f32 %v804, %v833
  %v841 = vadd.f32 %v805, %v833
  %v842 = vadd.f32 %v806, %v833
  %v843 = vadd.f32 %v807, %v833
  %v844 = vadd.f32 %v808, %v833
  %v845 = vadd.f32 %v809, %v833
  %v846 = vadd.f32 %v810, %v833
  %v847 = vadd.f32 %v811, %v833
  %v848 = vadd.f32 %v812, %v833
  %v849 = vadd.f32 %v813, %v833
  %v850 = vadd.f32 %v814, %v833
  %v851 = vadd.f32 %v815, %v833
  %v852 = vadd.f32 %v816, %v833
  %v853 = vadd.f32 %v817, %v833
  %v854 = vadd.f32 %v818, %v833
  %v855 = vadd.f32 %v819, %v833
  %v856 = vadd.f32 %v820, %v833
  %v857 = vadd.f32 %v821, %v833
  %v858 = vadd.f32 %v822, %v833
  %v859 = vadd.f32 %v823, %v833
  %v860 = vadd.f32 %v824, %v833
  %v861 = vadd.f32 %v825, %v833
  %v862 = vadd.f32 %v826, %v833
  %v863 = vadd.f32 %v827, %v833
  %v864 = vadd.f32 %v828, %v833
  %v865 = vadd.f32 %v829, %v833
  %v866 = vadd.f32 %v830, %v833
  %v867 = vmax.f32 %v835, 0.0
  %v868 = vmax.f32 %v836, 0.0
  %v869 = vmax.f32 %v837, 0.0
  %v870 = vmax.f32 %v838, 0.0
  %v871 = vmax.f32 %v839, 0.0
  %v872 = vmax.f32 %v840, 0.0
  %v873 = vmax.f32 %v841, 0.0
  %v874 = vmax.f32 %v842, 0.0
  %v875 = vmax.f32 %v843, 0.0
  %v876 = vmax.f32 %v844, 0.0
  %v877 = vmax.f32 %v845, 0.0
  %v878 = vmax.f32 %v846, 0.0
  %v879 = vmax.f32 %v847, 0.0
  %v880 = vmax.f32 %v848, 0.0
  %v881 = vmax.f32 %v849, 0.0
  %v882 = vmax.f32 %v850, 0.0
  %v883 = vmax.f32 %v851, 0.0
  %v884 = vmax.f32 %v852, 0.0
  %v885 = vmax.f32 %v853, 0.0
  %v886 = vmax.f32 %v854, 0.0
  %v887 = vmax.f32 %v855, 0.0
  %v888 = vmax.f32 %v856, 0.0
  %v889 = vmax.f32 %v857, 0.0
  %v890 = vmax.f32 %v858, 0.0
  %v891 = vmax.f32 %v859, 0.0
  %v892 = vmax.f32 %v860, 0.0
  %v893 = vmax.f32 %v861, 0.0
  %v894 = vmax.f32 %v862, 0.0
  %v895 = vmax.f32 %v863, 0.0
  %v896 = vmax.f32 %v864, 0.0
  %v897 = vmax.f32 %v865, 0.0
  %v898 = vmax.f32 %v866, 0.0
  %v899 = vld [vmem:[%s3] sm:$0xff]
  %v900 = vld [vmem:[%s3 + $0x8] sm:$0xff]
  %v901 = vld [vmem:[%s3 + $0x10] sm:$0xff]
  %v902 = vld [vmem:[%s3 + $0x18] sm:$0xff]
  %v903 = vld [vmem:[%s4] sm:$0x1]
  %v905 = vperm.slane %v903, 0
  %vm907 = vcmask 261120
  %v909 = vsel %vm907, %v867, 0
  %v912 = vsel %vm907, %v868, 0
  %v915 = vsel %vm907, %v869, 0
  %v918 = vsel %vm907, %v870, 0
  %v921 = vsel %vm907, %v871, 0
  %v924 = vsel %vm907, %v872, 0
  %v927 = vsel %vm907, %v873, 0
  %v930 = vsel %vm907, %v874, 0
  %v933 = vsel %vm907, %v875, 0
  %v936 = vsel %vm907, %v876, 0
  %v939 = vsel %vm907, %v877, 0
  %v942 = vsel %vm907, %v878, 0
  %v945 = vsel %vm907, %v879, 0
  %v948 = vsel %vm907, %v880, 0
  %v951 = vsel %vm907, %v881, 0
  %v954 = vsel %vm907, %v882, 0
  %v957 = vsel %vm907, %v883, 0
  %v960 = vsel %vm907, %v884, 0
  %v963 = vsel %vm907, %v885, 0
  %v966 = vsel %vm907, %v886, 0
  %v969 = vsel %vm907, %v887, 0
  %v972 = vsel %vm907, %v888, 0
  %v975 = vsel %vm907, %v889, 0
  %v978 = vsel %vm907, %v890, 0
  %v981 = vsel %vm907, %v891, 0
  %v984 = vsel %vm907, %v892, 0
  %v987 = vsel %vm907, %v893, 0
  %v990 = vsel %vm907, %v894, 0
  %v993 = vsel %vm907, %v895, 0
  %v996 = vsel %vm907, %v896, 0
  %v999 = vsel %vm907, %v897, 0
  %v1002 = vsel %vm907, %v898, 0
  %1004 = vmatpush.msra.mxu0 0.0
  %1005 = vmatpush.msra.mxu0 0.0
  %1006 = vmatpush.msra.mxu0 0.0
  %1007 = vmatpush.msra.mxu0 0.0
  %1008 = vmatpush.msra.mxu0 0.0
  %1009 = vmatpush.msra.mxu0 0.0
  %1010 = vmatpush.msra.mxu0 0.0
  %1011 = vmatpush.msra.mxu0 0.0
  %1012 = vmatpush.msra.mxu0 0.0
  %1013 = vmatpush.msra.mxu0 0.0
  %1014 = vmatpush.msra.mxu0 0.0
  %1015 = vmatpush.msra.mxu0 0.0
  %1016 = vmatpush.msra.mxu0 %v902
  %1017 = vmatpush.msra.mxu0 %v901
  %1018 = vmatpush.msra.mxu0 %v900
  %1019 = vmatpush.msra.mxu0 %v899
  %1020 = vmatmul.f32.gmra.mxu0 %v909
  %v1021 = vpop.f32.mrf.mxu0
  %v1022 = vadd.f32 %v905, %v1021
  %1023 = vmatmul.f32.gmra.mxu0 %v912
  %v1024 = vpop.f32.mrf.mxu0
  %v1025 = vadd.f32 %v905, %v1024
  %1026 = vmatmul.f32.gmra.mxu0 %v915
  %v1027 = vpop.f32.mrf.mxu0
  %v1028 = vadd.f32 %v905, %v1027
  %1029 = vmatmul.f32.gmra.mxu0 %v918
  %v1030 = vpop.f32.mrf.mxu0
  %v1031 = vadd.f32 %v905, %v1030
  %1032 = vmatmul.f32.gmra.mxu0 %v921
  %v1033 = vpop.f32.mrf.mxu0
  %v1034 = vadd.f32 %v905, %v1033
  %1035 = vmatmul.f32.gmra.mxu0 %v924
  %v1036 = vpop.f32.mrf.mxu0
  %v1037 = vadd.f32 %v905, %v1036
  %1038 = vmatmul.f32.gmra.mxu0 %v927
  %v1039 = vpop.f32.mrf.mxu0
  %v1040 = vadd.f32 %v905, %v1039
  %1041 = vmatmul.f32.gmra.mxu0 %v930
  %v1042 = vpop.f32.mrf.mxu0
  %v1043 = vadd.f32 %v905, %v1042
  %1044 = vmatmul.f32.gmra.mxu0 %v933
  %v1045 = vpop.f32.mrf.mxu0
  %v1046 = vadd.f32 %v905, %v1045
  %1047 = vmatmul.f32.gmra.mxu0 %v936
  %v1048 = vpop.f32.mrf.mxu0
  %v1049 = vadd.f32 %v905, %v1048
  %1050 = vmatmul.f32.gmra.mxu0 %v939
  %v1051 = vpop.f32.mrf.mxu0
  %v1052 = vadd.f32 %v905, %v1051
  %1053 = vmatmul.f32.gmra.mxu0 %v942
  %v1054 = vpop.f32.mrf.mxu0
  %v1055 = vadd.f32 %v905, %v1054
  %1056 = vmatmul.f32.gmra.mxu0 %v945
  %v1057 = vpop.f32.mrf.mxu0
  %v1058 = vadd.f32 %v905, %v1057
  %1059 = vmatmul.f32.gmra.mxu0 %v948
  %v1060 = vpop.f32.mrf.mxu0
  %v1061 = vadd.f32 %v905, %v1060
  %1062 = vmatmul.f32.gmra.mxu0 %v951
  %v1063 = vpop.f32.mrf.mxu0
  %v1064 = vadd.f32 %v905, %v1063
  %1065 = vmatmul.f32.gmra.mxu0 %v954
  %v1066 = vpop.f32.mrf.mxu0
  %v1067 = vadd.f32 %v905, %v1066
  %1068 = vmatmul.f32.gmra.mxu0 %v957
  %v1069 = vpop.f32.mrf.mxu0
  %v1070 = vadd.f32 %v905, %v1069
  %1071 = vmatmul.f32.gmra.mxu0 %v960
  %v1072 = vpop.f32.mrf.mxu0
  %v1073 = vadd.f32 %v905, %v1072
  %1074 = vmatmul.f32.gmra.mxu0 %v963
  %v1075 = vpop.f32.mrf.mxu0
  %v1076 = vadd.f32 %v905, %v1075
  %1077 = vmatmul.f32.gmra.mxu0 %v966
  %v1078 = vpop.f32.mrf.mxu0
  %v1079 = vadd.f32 %v905, %v1078
  %1080 = vmatmul.f32.gmra.mxu0 %v969
  %v1081 = vpop.f32.mrf.mxu0
  %v1082 = vadd.f32 %v905, %v1081
  %1083 = vmatmul.f32.gmra.mxu0 %v972
  %v1084 = vpop.f32.mrf.mxu0
  %v1085 = vadd.f32 %v905, %v1084
  %1086 = vmatmul.f32.gmra.mxu0 %v975
  %v1087 = vpop.f32.mrf.mxu0
  %v1088 = vadd.f32 %v905, %v1087
  %1089 = vmatmul.f32.gmra.mxu0 %v978
  %v1090 = vpop.f32.mrf.mxu0
  %v1091 = vadd.f32 %v905, %v1090
  %1092 = vmatmul.f32.gmra.mxu0 %v981
  %v1093 = vpop.f32.mrf.mxu0
  %v1094 = vadd.f32 %v905, %v1093
  %1095 = vmatmul.f32.gmra.mxu0 %v984
  %v1096 = vpop.f32.mrf.mxu0
  %v1097 = vadd.f32 %v905, %v1096
  %1098 = vmatmul.f32.gmra.mxu0 %v987
  %v1099 = vpop.f32.mrf.mxu0
  %v1100 = vadd.f32 %v905, %v1099
  %1101 = vmatmul.f32.gmra.mxu0 %v990
  %v1102 = vpop.f32.mrf.mxu0
  %v1103 = vadd.f32 %v905, %v1102
  %1104 = vmatmul.f32.gmra.mxu0 %v993
  %v1105 = vpop.f32.mrf.mxu0
  %v1106 = vadd.f32 %v905, %v1105
  %1107 = vmatmul.f32.gmra.mxu0 %v996
  %v1108 = vpop.f32.mrf.mxu0
  %v1109 = vadd.f32 %v905, %v1108
  %1110 = vmatmul.f32.gmra.mxu0 %v999
  %v1111 = vpop.f32.mrf.mxu0
  %v1112 = vadd.f32 %v905, %v1111
  %1113 = vmatmul.f32.gmra.mxu0 %v1002
  %v1114 = vpop.f32.mrf.mxu0
  %v1115 = vadd.f32 %v905, %v1114
  %1116 = vdwg.mxu0
  %v1117 = vmax.f32 %v1022, 0.0
  %v1118 = vmax.f32 %v1025, 0.0
  %v1119 = vmax.f32 %v1028, 0.0
  %v1120 = vmax.f32 %v1031, 0.0
  %v1121 = vmax.f32 %v1034, 0.0
  %v1122 = vmax.f32 %v1037, 0.0
  %v1123 = vmax.f32 %v1040, 0.0
  %v1124 = vmax.f32 %v1043, 0.0
  %v1125 = vmax.f32 %v1046, 0.0
  %v1126 = vmax.f32 %v1049, 0.0
  %v1127 = vmax.f32 %v1052, 0.0
  %v1128 = vmax.f32 %v1055, 0.0
  %v1129 = vmax.f32 %v1058, 0.0
  %v1130 = vmax.f32 %v1061, 0.0
  %v1131 = vmax.f32 %v1064, 0.0
  %v1132 = vmax.f32 %v1067, 0.0
  %v1133 = vmax.f32 %v1070, 0.0
  %v1134 = vmax.f32 %v1073, 0.0
  %v1135 = vmax.f32 %v1076, 0.0
  %v1136 = vmax.f32 %v1079, 0.0
  %v1137 = vmax.f32 %v1082, 0.0
  %v1138 = vmax.f32 %v1085, 0.0
  %v1139 = vmax.f32 %v1088, 0.0
  %v1140 = vmax.f32 %v1091, 0.0
  %v1141 = vmax.f32 %v1094, 0.0
  %v1142 = vmax.f32 %v1097, 0.0
  %v1143 = vmax.f32 %v1100, 0.0
  %v1144 = vmax.f32 %v1103, 0.0
  %v1145 = vmax.f32 %v1106, 0.0
  %v1146 = vmax.f32 %v1109, 0.0
  %v1147 = vmax.f32 %v1112, 0.0
  %v1148 = vmax.f32 %v1115, 0.0
  %v1149 = vld [vmem:[%s5] sm:$0xff]
  %v1150 = vld [vmem:[%s5 + $0x8] sm:$0xff]
  %v1151 = vld [vmem:[%s5 + $0x10] sm:$0xff]
  %v1152 = vld [vmem:[%s5 + $0x18] sm:$0xff]
  %v1153 = vld [vmem:[%s6] sm:$0x1]
  %v1155 = vperm.slane %v1153, 0
  %v1158 = vsel %vm907, %v1117, 0
  %v1161 = vsel %vm907, %v1118, 0
  %v1164 = vsel %vm907, %v1119, 0
  %v1167 = vsel %vm907, %v1120, 0
  %v1170 = vsel %vm907, %v1121, 0
  %v1173 = vsel %vm907, %v1122, 0
  %v1176 = vsel %vm907, %v1123, 0
  %v1179 = vsel %vm907, %v1124, 0
  %v1182 = vsel %vm907, %v1125, 0
  %v1185 = vsel %vm907, %v1126, 0
  %v1188 = vsel %vm907, %v1127, 0
  %v1191 = vsel %vm907, %v1128, 0
  %v1194 = vsel %vm907, %v1129, 0
  %v1197 = vsel %vm907, %v1130, 0
  %v1200 = vsel %vm907, %v1131, 0
  %v1203 = vsel %vm907, %v1132, 0
  %v1206 = vsel %vm907, %v1133, 0
  %v1209 = vsel %vm907, %v1134, 0
  %v1212 = vsel %vm907, %v1135, 0
  %v1215 = vsel %vm907, %v1136, 0
  %v1218 = vsel %vm907, %v1137, 0
  %v1221 = vsel %vm907, %v1138, 0
  %v1224 = vsel %vm907, %v1139, 0
  %v1227 = vsel %vm907, %v1140, 0
  %v1230 = vsel %vm907, %v1141, 0
  %v1233 = vsel %vm907, %v1142, 0
  %v1236 = vsel %vm907, %v1143, 0
  %v1239 = vsel %vm907, %v1144, 0
  %v1242 = vsel %vm907, %v1145, 0
  %v1245 = vsel %vm907, %v1146, 0
  %v1248 = vsel %vm907, %v1147, 0
  %v1251 = vsel %vm907, %v1148, 0
  %1253 = vmatpush.msra.mxu0 0.0
  %1254 = vmatpush.msra.mxu0 0.0
  %1255 = vmatpush.msra.mxu0 0.0
  %1256 = vmatpush.msra.mxu0 0.0
  %1257 = vmatpush.msra.mxu0 0.0
  %1258 = vmatpush.msra.mxu0 0.0
  %1259 = vmatpush.msra.mxu0 0.0
  %1260 = vmatpush.msra.mxu0 0.0
  %1261 = vmatpush.msra.mxu0 0.0
  %1262 = vmatpush.msra.mxu0 0.0
  %1263 = vmatpush.msra.mxu0 0.0
  %1264 = vmatpush.msra.mxu0 0.0
  %1265 = vmatpush.msra.mxu0 %v1152
  %1266 = vmatpush.msra.mxu0 %v1151
  %1267 = vmatpush.msra.mxu0 %v1150
  %1268 = vmatpush.msra.mxu0 %v1149
  %1269 = vmatmul.f32.gmra.mxu0 %v1158
  %v1270 = vpop.f32.mrf.mxu0
  %v1271 = vadd.f32 %v1155, %v1270
  %1272 = vmatmul.f32.gmra.mxu0 %v1161
  %v1273 = vpop.f32.mrf.mxu0
  %v1274 = vadd.f32 %v1155, %v1273
  %1275 = vmatmul.f32.gmra.mxu0 %v1164
  %v1276 = vpop.f32.mrf.mxu0
  %v1277 = vadd.f32 %v1155, %v1276
  %1278 = vmatmul.f32.gmra.mxu0 %v1167
  %v1279 = vpop.f32.mrf.mxu0
  %v1280 = vadd.f32 %v1155, %v1279
  %1281 = vmatmul.f32.gmra.mxu0 %v1170
  %v1282 = vpop.f32.mrf.mxu0
  %v1283 = vadd.f32 %v1155, %v1282
  %1284 = vmatmul.f32.gmra.mxu0 %v1173
  %v1285 = vpop.f32.mrf.mxu0
  %v1286 = vadd.f32 %v1155, %v1285
  %1287 = vmatmul.f32.gmra.mxu0 %v1176
  %v1288 = vpop.f32.mrf.mxu0
  %v1289 = vadd.f32 %v1155, %v1288
  %1290 = vmatmul.f32.gmra.mxu0 %v1179
  %v1291 = vpop.f32.mrf.mxu0
  %v1292 = vadd.f32 %v1155, %v1291
  %1293 = vmatmul.f32.gmra.mxu0 %v1182
  %v1294 = vpop.f32.mrf.mxu0
  %v1295 = vadd.f32 %v1155, %v1294
  %1296 = vmatmul.f32.gmra.mxu0 %v1185
  %v1297 = vpop.f32.mrf.mxu0
  %v1298 = vadd.f32 %v1155, %v1297
  %1299 = vmatmul.f32.gmra.mxu0 %v1188
  %v1300 = vpop.f32.mrf.mxu0
  %v1301 = vadd.f32 %v1155, %v1300
  %1302 = vmatmul.f32.gmra.mxu0 %v1191
  %v1303 = vpop.f32.mrf.mxu0
  %v1304 = vadd.f32 %v1155, %v1303
  %1305 = vmatmul.f32.gmra.mxu0 %v1194
  %v1306 = vpop.f32.mrf.mxu0
  %v1307 = vadd.f32 %v1155, %v1306
  %1308 = vmatmul.f32.gmra.mxu0 %v1197
  %v1309 = vpop.f32.mrf.mxu0
  %v1310 = vadd.f32 %v1155, %v1309
  %1311 = vmatmul.f32.gmra.mxu0 %v1200
  %v1312 = vpop.f32.mrf.mxu0
  %v1313 = vadd.f32 %v1155, %v1312
  %1314 = vmatmul.f32.gmra.mxu0 %v1203
  %v1315 = vpop.f32.mrf.mxu0
  %v1316 = vadd.f32 %v1155, %v1315
  %1317 = vmatmul.f32.gmra.mxu0 %v1206
  %v1318 = vpop.f32.mrf.mxu0
  %v1319 = vadd.f32 %v1155, %v1318
  %1320 = vmatmul.f32.gmra.mxu0 %v1209
  %v1321 = vpop.f32.mrf.mxu0
  %v1322 = vadd.f32 %v1155, %v1321
  %1323 = vmatmul.f32.gmra.mxu0 %v1212
  %v1324 = vpop.f32.mrf.mxu0
  %v1325 = vadd.f32 %v1155, %v1324
  %1326 = vmatmul.f32.gmra.mxu0 %v1215
  %v1327 = vpop.f32.mrf.mxu0
  %v1328 = vadd.f32 %v1155, %v1327
  %1329 = vmatmul.f32.gmra.mxu0 %v1218
  %v1330 = vpop.f32.mrf.mxu0
  %v1331 = vadd.f32 %v1155, %v1330
  %1332 = vmatmul.f32.gmra.mxu0 %v1221
  %v1333 = vpop.f32.mrf.mxu0
  %v1334 = vadd.f32 %v1155, %v1333
  %1335 = vmatmul.f32.gmra.mxu0 %v1224
  %v1336 = vpop.f32.mrf.mxu0
  %v1337 = vadd.f32 %v1155, %v1336
  %1338 = vmatmul.f32.gmra.mxu0 %v1227
  %v1339 = vpop.f32.mrf.mxu0
  %v1340 = vadd.f32 %v1155, %v1339
  %1341 = vmatmul.f32.gmra.mxu0 %v1230
  %v1342 = vpop.f32.mrf.mxu0
  %v1343 = vadd.f32 %v1155, %v1342
  %1344 = vmatmul.f32.gmra.mxu0 %v1233
  %v1345 = vpop.f32.mrf.mxu0
  %v1346 = vadd.f32 %v1155, %v1345
  %1347 = vmatmul.f32.gmra.mxu0 %v1236
  %v1348 = vpop.f32.mrf.mxu0
  %v1349 = vadd.f32 %v1155, %v1348
  %1350 = vmatmul.f32.gmra.mxu0 %v1239
  %v1351 = vpop.f32.mrf.mxu0
  %v1352 = vadd.f32 %v1155, %v1351
  %1353 = vmatmul.f32.gmra.mxu0 %v1242
  %v1354 = vpop.f32.mrf.mxu0
  %v1355 = vadd.f32 %v1155, %v1354
  %1356 = vmatmul.f32.gmra.mxu0 %v1245
  %v1357 = vpop.f32.mrf.mxu0
  %v1358 = vadd.f32 %v1155, %v1357
  %1359 = vmatmul.f32.gmra.mxu0 %v1248
  %v1360 = vpop.f32.mrf.mxu0
  %v1361 = vadd.f32 %v1155, %v1360
  %1362 = vmatmul.f32.gmra.mxu0 %v1251
  %v1363 = vpop.f32.mrf.mxu0
  %v1364 = vadd.f32 %v1155, %v1363
  %1365 = vdwg.mxu0
  %v1366 = vtanh.pop %v1271
  %v1367 = vtanh.pop %v1274
  %v1368 = vtanh.pop %v1277
  %v1369 = vtanh.pop %v1280
  %v1370 = vtanh.pop %v1283
  %v1371 = vtanh.pop %v1286
  %v1372 = vtanh.pop %v1289
  %v1373 = vtanh.pop %v1292
  %v1374 = vtanh.pop %v1295
  %v1375 = vtanh.pop %v1298
  %v1376 = vtanh.pop %v1301
  %v1377 = vtanh.pop %v1304
  %v1378 = vtanh.pop %v1307
  %v1379 = vtanh.pop %v1310
  %v1380 = vtanh.pop %v1313
  %v1381 = vtanh.pop %v1316
  %v1382 = vtanh.pop %v1319
  %v1383 = vtanh.pop %v1322
  %v1384 = vtanh.pop %v1325
  %v1385 = vtanh.pop %v1328
  %v1386 = vtanh.pop %v1331
  %v1387 = vtanh.pop %v1334
  %v1388 = vtanh.pop %v1337
  %v1389 = vtanh.pop %v1340
  %v1390 = vtanh.pop %v1343
  %v1391 = vtanh.pop %v1346
  %v1392 = vtanh.pop %v1349
  %v1393 = vtanh.pop %v1352
  %v1394 = vtanh.pop %v1355
  %v1395 = vtanh.pop %v1358
  %v1396 = vtanh.pop %v1361
  %v1397 = vtanh.pop %v1364
  %v1398 = vmul.f32 %v1366, 20.0
  %v1399 = vmul.f32 %v1367, 20.0
  %v1400 = vmul.f32 %v1368, 20.0
  %v1401 = vmul.f32 %v1369, 20.0
  %v1402 = vmul.f32 %v1370, 20.0
  %v1403 = vmul.f32 %v1371, 20.0
  %v1404 = vmul.f32 %v1372, 20.0
  %v1405 = vmul.f32 %v1373, 20.0
  %v1406 = vmul.f32 %v1374, 20.0
  %v1407 = vmul.f32 %v1375, 20.0
  %v1408 = vmul.f32 %v1376, 20.0
  %v1409 = vmul.f32 %v1377, 20.0
  %v1410 = vmul.f32 %v1378, 20.0
  %v1411 = vmul.f32 %v1379, 20.0
  %v1412 = vmul.f32 %v1380, 20.0
  %v1413 = vmul.f32 %v1381, 20.0
  %v1414 = vmul.f32 %v1382, 20.0
  %v1415 = vmul.f32 %v1383, 20.0
  %v1416 = vmul.f32 %v1384, 20.0
  %v1417 = vmul.f32 %v1385, 20.0
  %v1418 = vmul.f32 %v1386, 20.0
  %v1419 = vmul.f32 %v1387, 20.0
  %v1420 = vmul.f32 %v1388, 20.0
  %v1421 = vmul.f32 %v1389, 20.0
  %v1422 = vmul.f32 %v1390, 20.0
  %v1423 = vmul.f32 %v1391, 20.0
  %v1424 = vmul.f32 %v1392, 20.0
  %v1425 = vmul.f32 %v1393, 20.0
  %v1426 = vmul.f32 %v1394, 20.0
  %v1427 = vmul.f32 %v1395, 20.0
  %v1428 = vmul.f32 %v1396, 20.0
  %v1429 = vmul.f32 %v1397, 20.0
  %vm1430 = vcmask 15360
  %1431 = vst.msk [vmem:[%s7] sm:$0xff] %vm1430, %v1398
  %1432 = vst.msk [vmem:[%s7 + $0x8] sm:$0xff] %vm1430, %v1399
  %1433 = vst.msk [vmem:[%s7 + $0x10] sm:$0xff] %vm1430, %v1400
  %1434 = vst.msk [vmem:[%s7 + $0x18] sm:$0xff] %vm1430, %v1401
  %1435 = vst.msk [vmem:[%s7 + $0x20] sm:$0xff] %vm1430, %v1402
  %1436 = vst.msk [vmem:[%s7 + $0x28] sm:$0xff] %vm1430, %v1403
  %1437 = vst.msk [vmem:[%s7 + $0x30] sm:$0xff] %vm1430, %v1404
  %1438 = vst.msk [vmem:[%s7 + $0x38] sm:$0xff] %vm1430, %v1405
  %1439 = vst.msk [vmem:[%s7 + $0x40] sm:$0xff] %vm1430, %v1406
  %1440 = vst.msk [vmem:[%s7 + $0x48] sm:$0xff] %vm1430, %v1407
  %1441 = vst.msk [vmem:[%s7 + $0x50] sm:$0xff] %vm1430, %v1408
  %1442 = vst.msk [vmem:[%s7 + $0x58] sm:$0xff] %vm1430, %v1409
  %1443 = vst.msk [vmem:[%s7 + $0x60] sm:$0xff] %vm1430, %v1410
  %1444 = vst.msk [vmem:[%s7 + $0x68] sm:$0xff] %vm1430, %v1411
  %1445 = vst.msk [vmem:[%s7 + $0x70] sm:$0xff] %vm1430, %v1412
  %1446 = vst.msk [vmem:[%s7 + $0x78] sm:$0xff] %vm1430, %v1413
  %1447 = vst.msk [vmem:[%s7 + $0x80] sm:$0xff] %vm1430, %v1414
  %1448 = vst.msk [vmem:[%s7 + $0x88] sm:$0xff] %vm1430, %v1415
  %1449 = vst.msk [vmem:[%s7 + $0x90] sm:$0xff] %vm1430, %v1416
  %1450 = vst.msk [vmem:[%s7 + $0x98] sm:$0xff] %vm1430, %v1417
  %1451 = vst.msk [vmem:[%s7 + $0xa0] sm:$0xff] %vm1430, %v1418
  %1452 = vst.msk [vmem:[%s7 + $0xa8] sm:$0xff] %vm1430, %v1419
  %1453 = vst.msk [vmem:[%s7 + $0xb0] sm:$0xff] %vm1430, %v1420
  %1454 = vst.msk [vmem:[%s7 + $0xb8] sm:$0xff] %vm1430, %v1421
  %1455 = vst.msk [vmem:[%s7 + $0xc0] sm:$0xff] %vm1430, %v1422
  %1456 = vst.msk [vmem:[%s7 + $0xc8] sm:$0xff] %vm1430, %v1423
  %1457 = vst.msk [vmem:[%s7 + $0xd0] sm:$0xff] %vm1430, %v1424
  %1458 = vst.msk [vmem:[%s7 + $0xd8] sm:$0xff] %vm1430, %v1425
  %1459 = vst.msk [vmem:[%s7 + $0xe0] sm:$0xff] %vm1430, %v1426
  %1460 = vst.msk [vmem:[%s7 + $0xe8] sm:$0xff] %vm1430, %v1427
  %1461 = vst.msk [vmem:[%s7 + $0xf0] sm:$0xff] %vm1430, %v1428
  %1462 = vst.msk [vmem:[%s7 + $0xf8] sm:$0xff] %vm1430, %v1429
  // Predicated region
  $region30: #{tpu_custom_call.1} parent=0 // pred_check
    _
  $region31: #{tpu_custom_call.1} parent=0 // pred_check_branch
    %1464 = sbr.rel (0) target = $region33
  $region32: #{tpu_custom_call.1} parent=0 // pred_region
    _
  $region33: #{tpu_custom_call.1} parent=0 // pred_fallthru
    _
  // Predicated region
  $region34: #{tpu_custom_call.1} parent=0 // pred_check
    _
  $region35: #{tpu_custom_call.1} parent=0 // pred_check_branch
    %1466 = sbr.rel (0) target = $region37
  $region36: #{tpu_custom_call.1} parent=0 // pred_region
    _
  $region37: #{tpu_custom_call.1} parent=0 // pred_fallthru
    _

</llo_original>
